<compile_context>
chip_gen: v7x
topology: tpu7x:2x2x1
jax: 0.10.0
libtpu: 0.0.40
codegen_flags: <defaults>
</compile_context>

<pallas_src>
import jax
import jax.numpy as jnp
from jax.experimental import pallas as pl
from jax.experimental.pallas import tpu as pltpu


def policy_kernel(x_ref, w1_ref, b1_ref, w2_ref, b2_ref, wh_ref, bh_ref, out_ref):
    x = x_ref[...]                                                     # (state_dim, TB)

    # fc layer 1: Linear(state_dim, 64) + ReLU   -> (64, TB)
    h1 = jnp.dot(w1_ref[...], x, preferred_element_type=jnp.float32) + b1_ref[...]
    h1 = jnp.maximum(h1, 0.0)

    # fc layer 2: Linear(64, 32) + ReLU          -> (32, TB)
    h2 = jnp.dot(w2_ref[...], h1, preferred_element_type=jnp.float32) + b2_ref[...]
    h2 = jnp.maximum(h2, 0.0)

    # fused heads: rows [0:A) = 2*mean, rows [A:2A) = log_std  (2.0 folded into wh/bh)
    h = jnp.dot(wh_ref[...], h2, preferred_element_type=jnp.float32) + bh_ref[...]

    a = wh_ref.shape[0] // 2                                           # static
    out_ref[:a, :] = h[:a, :]                                          # mean rows pass through
    out_ref[a:, :] = jnp.exp(h[a:, :])                                 # std rows (EUP only here)


def _round_up(n, m):
    return ((n + m - 1) // m) * m


def pack_params(p):
    """One-time param transform: transpose for the batch-on-lanes layout, fold the 2.0
    mean scale, and concatenate the two heads."""
    wh = jnp.concatenate([2.0 * p["wm"], p["ws"]], axis=1)             # (32, 2A)
    bh = jnp.concatenate([2.0 * p["bm"], p["bs"]], axis=1)             # (1, 2A)
    return dict(
        w1=p["w1"].T,                                                  # (64, state_dim)
        b1=p["b1"].T,                                                  # (64, 1)
        w2=p["w2"].T,                                                  # (32, 64)
        b2=p["b2"].T,                                                  # (32, 1)
        wh=wh.T,                                                       # (2A, 32)
        bh=bh.T,                                                       # (2A, 1)
    )


def policy_network_forward(state, packed, *, max_tile=8192):
    """state: (B, state_dim) f32. packed: from pack_params. Returns (mean, std)."""
    B, state_dim = state.shape
    two_a = packed["wh"].shape[0]
    action_dim = two_a // 2

    # Batch tile on the lane axis: multiple of 128, as large as possible (amortizes the
    # ~600-cycle per-grid-step overhead), capped so VMEM stays trivial on all chips.
    B_lane = _round_up(B, 128)
    n_tiles = pl.cdiv(B_lane, max_tile)
    # v7x: keep grid >= 2 when the batch is big enough so the parallel axis can use
    # both TensorCores (no-op for small batches / single-TC chips).
    if n_tiles == 1 and B_lane >= 4096:
        n_tiles = 2
    TB = _round_up(pl.cdiv(B_lane, n_tiles), 128)
    B_pad = n_tiles * TB

    # Transpose so batch is the lane (last) axis, then pad lanes to B_pad.
    x_t = state.T                                                      # (state_dim, B)
    if B_pad != B:
        x_t = jnp.pad(x_t, ((0, 0), (0, B_pad - B)))

    def const_spec(arr):
        nd = arr.ndim
        return pl.BlockSpec(arr.shape, lambda i, _nd=nd: (0,) * _nd)   # weights stay resident

    flops = 2 * B_pad * (state_dim * 64 + 64 * 32 + 32 * two_a)
    bytes_accessed = 4 * (
        B_pad * (state_dim + two_a)                                    # streamed x + out
        + 64 * state_dim + 64 + 32 * 64 + 32 + two_a * 32 + two_a      # resident params
    )

    out = pl.pallas_call(
        policy_kernel,
        out_shape=jax.ShapeDtypeStruct((two_a, B_pad), jnp.float32),
        grid=(n_tiles,),
        in_specs=[
            pl.BlockSpec((state_dim, TB), lambda i: (0, i)),           # streamed per tile
            const_spec(packed["w1"]), const_spec(packed["b1"]),
            const_spec(packed["w2"]), const_spec(packed["b2"]),
            const_spec(packed["wh"]), const_spec(packed["bh"]),
        ],
        out_specs=pl.BlockSpec((two_a, TB), lambda i: (0, i)),
        compiler_params=pltpu.CompilerParams(
            dimension_semantics=("parallel",),                         # v7x: 2 TCs; no-op on v5e/v6e
        ),
        cost_estimate=pl.CostEstimate(
            flops=int(flops),
            bytes_accessed=int(bytes_accessed),
            transcendentals=int(B_pad * action_dim),
        ),
    )(x_t, packed["w1"], packed["b1"], packed["w2"], packed["b2"],
      packed["wh"], packed["bh"])

    # TODO(synk): optional bf16 streaming of x/out on v6e/v7x (f32 accumulate) would halve
    # HBM bytes but does not meet the 1e-4 check used here, so f32 I/O is kept.
    mean = out[:action_dim, :B].T                                      # (B, A)
    std = out[action_dim:, :B].T                                       # (B, A)
    return mean, std


def init_params(key, state_dim, action_dim):
    """Deterministic init mimicking PyTorch Linear default (uniform +/- 1/sqrt(fan_in))."""
    def linear(k, fan_in, fan_out):
        kw, kb = jax.random.split(k)
        bound = 1.0 / jnp.sqrt(fan_in)
        w = jax.random.uniform(kw, (fan_in, fan_out), jnp.float32, -bound, bound)
        b = jax.random.uniform(kb, (1, fan_out), jnp.float32, -bound, bound)
        return w, b

    k1, k2, k3, k4 = jax.random.split(key, 4)
    w1, b1 = linear(k1, state_dim, 64)
    w2, b2 = linear(k2, 64, 32)
    wm, bm = linear(k3, 32, action_dim)
    ws, bs = linear(k4, 32, action_dim)
    return dict(w1=w1, b1=b1, w2=w2, b2=b2, wm=wm, bm=bm, ws=ws, bs=bs)


def reference_forward(state, p):
    h1 = jnp.maximum(state @ p["w1"] + p["b1"], 0.0)
    h2 = jnp.maximum(h1 @ p["w2"] + p["b2"], 0.0)
    mean = 2.0 * (h2 @ p["wm"] + p["bm"])
    std = jnp.exp(h2 @ p["ws"] + p["bs"])
    return mean, std


if __name__ == "__main__":
    B, state_dim, action_dim = 8, 8, 4

    key = jax.random.PRNGKey(0)
    k_state, k_params = jax.random.split(key)

    state = jax.random.normal(k_state, (B, state_dim), jnp.float32)
    params = init_params(k_params, state_dim, action_dim)
    packed = pack_params(params)                                       # one-time transform

    mean, std = policy_network_forward(state, packed)
    jax.block_until_ready((mean, std))

    ref_mean, ref_std = reference_forward(state, params)
    assert mean.shape == (B, action_dim) and std.shape == (B, action_dim)
    assert jnp.allclose(mean, ref_mean, atol=1e-4, rtol=1e-4)
    assert jnp.allclose(std, ref_std, atol=1e-4, rtol=1e-4)

    print("KERNEL_OK")
</pallas_src>

<mosaic_0001>
module attributes {stable_mosaic.version = 11 : i64} {
  func.func @policy_kernel(%arg0: i32, %arg1: memref<8x128xf32, #tpu.memory_space<vmem>>, %arg2: memref<64x8xf32, #tpu.memory_space<vmem>>, %arg3: memref<64x1xf32, #tpu.memory_space<vmem>>, %arg4: memref<32x64xf32, #tpu.memory_space<vmem>>, %arg5: memref<32x1xf32, #tpu.memory_space<vmem>>, %arg6: memref<8x32xf32, #tpu.memory_space<vmem>>, %arg7: memref<8x1xf32, #tpu.memory_space<vmem>>, %arg8: memref<8x128xf32, #tpu.memory_space<vmem>>) attributes {dimension_semantics = [#tpu.dimension_semantics<parallel>], iteration_bounds = array<i64: 1>, scalar_prefetch = 0 : i64, scratch_operands = 0 : i64, tpu.core_type = #tpu.core_type<tc>, window_params = [{transform_indices = @transform_0, window_bounds = array<i64: 8, 128>}, {pipeline_mode = #tpu.pipeline_mode<synchronous>, transform_indices = @transform_1, window_bounds = array<i64: 64, 8>}, {pipeline_mode = #tpu.pipeline_mode<synchronous>, transform_indices = @transform_2, window_bounds = array<i64: 64, 1>}, {pipeline_mode = #tpu.pipeline_mode<synchronous>, transform_indices = @transform_3, window_bounds = array<i64: 32, 64>}, {pipeline_mode = #tpu.pipeline_mode<synchronous>, transform_indices = @transform_4, window_bounds = array<i64: 32, 1>}, {pipeline_mode = #tpu.pipeline_mode<synchronous>, transform_indices = @transform_5, window_bounds = array<i64: 8, 32>}, {pipeline_mode = #tpu.pipeline_mode<synchronous>, transform_indices = @transform_6, window_bounds = array<i64: 8, 1>}, {transform_indices = @transform_7, window_bounds = array<i64: 8, 128>}]} {
    %c0 = arith.constant 0 : index
    %c0_0 = arith.constant 0 : index
    %0 = vector.load %arg1[%c0, %c0_0] : memref<8x128xf32, #tpu.memory_space<vmem>>, vector<8x128xf32>
    %c0_1 = arith.constant 0 : index
    %c0_2 = arith.constant 0 : index
    %1 = vector.load %arg2[%c0_1, %c0_2] : memref<64x8xf32, #tpu.memory_space<vmem>>, vector<64x8xf32>
    %cst = arith.constant dense<0.000000e+00> : vector<64x128xf32>
    %2 = tpu.matmul %1, %0, %cst {dimension_numbers = #tpu.dot_dimension_numbers<[1], [0], [0], [1], [0, 0, 1, 1], [], []>} : vector<64x8xf32>, vector<8x128xf32>, vector<64x128xf32> -> vector<64x128xf32>
    %c0_3 = arith.constant 0 : index
    %c0_4 = arith.constant 0 : index
    %3 = vector.load %arg3[%c0_3, %c0_4] : memref<64x1xf32, #tpu.memory_space<vmem>>, vector<64x1xf32>
    %4 = vector.broadcast %3 : vector<64x1xf32> to vector<64x128xf32>
    %5 = arith.addf %2, %4 : vector<64x128xf32>
    %cst_5 = arith.constant 0.000000e+00 : f32
    %6 = vector.broadcast %cst_5 : f32 to vector<64x128xf32>
    %7 = arith.maximumf %5, %6 : vector<64x128xf32>
    %c0_6 = arith.constant 0 : index
    %c0_7 = arith.constant 0 : index
    %8 = vector.load %arg4[%c0_6, %c0_7] : memref<32x64xf32, #tpu.memory_space<vmem>>, vector<32x64xf32>
    %cst_8 = arith.constant dense<0.000000e+00> : vector<32x128xf32>
    %9 = tpu.matmul %8, %7, %cst_8 {dimension_numbers = #tpu.dot_dimension_numbers<[1], [0], [0], [1], [0, 0, 1, 1], [], []>} : vector<32x64xf32>, vector<64x128xf32>, vector<32x128xf32> -> vector<32x128xf32>
    %c0_9 = arith.constant 0 : index
    %c0_10 = arith.constant 0 : index
    %10 = vector.load %arg5[%c0_9, %c0_10] : memref<32x1xf32, #tpu.memory_space<vmem>>, vector<32x1xf32>
    %11 = vector.broadcast %10 : vector<32x1xf32> to vector<32x128xf32>
    %12 = arith.addf %9, %11 : vector<32x128xf32>
    %cst_11 = arith.constant 0.000000e+00 : f32
    %13 = vector.broadcast %cst_11 : f32 to vector<32x128xf32>
    %14 = arith.maximumf %12, %13 : vector<32x128xf32>
    %c0_12 = arith.constant 0 : index
    %c0_13 = arith.constant 0 : index
    %15 = vector.load %arg6[%c0_12, %c0_13] : memref<8x32xf32, #tpu.memory_space<vmem>>, vector<8x32xf32>
    %cst_14 = arith.constant dense<0.000000e+00> : vector<8x128xf32>
    %16 = tpu.matmul %15, %14, %cst_14 {dimension_numbers = #tpu.dot_dimension_numbers<[1], [0], [0], [1], [0, 0, 1, 1], [], []>} : vector<8x32xf32>, vector<32x128xf32>, vector<8x128xf32> -> vector<8x128xf32>
    %c0_15 = arith.constant 0 : index
    %c0_16 = arith.constant 0 : index
    %17 = vector.load %arg7[%c0_15, %c0_16] : memref<8x1xf32, #tpu.memory_space<vmem>>, vector<8x1xf32>
    %18 = vector.broadcast %17 : vector<8x1xf32> to vector<8x128xf32>
    %19 = arith.addf %16, %18 : vector<8x128xf32>
    %20 = vector.extract_strided_slice %19 {offsets = [0, 0], sizes = [4, 128], strides = [1, 1]} : vector<8x128xf32> to vector<4x128xf32>
    %c0_17 = arith.constant 0 : index
    %c0_18 = arith.constant 0 : index
    %21 = vector.load %arg8[%c0_17, %c0_18] : memref<8x128xf32, #tpu.memory_space<vmem>>, vector<4x128xf32>
    tpu.vector_store %arg8[%c0_17, %c0_18], %20 {strides = array<i32>} : memref<8x128xf32, #tpu.memory_space<vmem>>, vector<4x128xf32>,
    %22 = vector.extract_strided_slice %19 {offsets = [4, 0], sizes = [4, 128], strides = [1, 1]} : vector<8x128xf32> to vector<4x128xf32>
    %23 = math.exp %22 : vector<4x128xf32>
    %c4 = arith.constant 4 : index
    %c0_19 = arith.constant 0 : index
    %24 = vector.load %arg8[%c4, %c0_19] : memref<8x128xf32, #tpu.memory_space<vmem>>, vector<4x128xf32>
    tpu.vector_store %arg8[%c4, %c0_19], %23 {strides = array<i32>} : memref<8x128xf32, #tpu.memory_space<vmem>>, vector<4x128xf32>,
    return
  }
  func.func @transform_0(%arg0: i32) -> (i32, i32) {
    %c0_i32 = arith.constant 0 : i32
    %c0_i32_0 = arith.constant 0 : i32
    return %c0_i32, %arg0 : i32, i32
  }
  func.func @transform_1(%arg0: i32) -> (i32, i32) {
    %c0_i32 = arith.constant 0 : i32
    %c0_i32_0 = arith.constant 0 : i32
    %c0_i32_1 = arith.constant 0 : i32
    return %c0_i32, %c0_i32_0 : i32, i32
  }
  func.func @transform_2(%arg0: i32) -> (i32, i32) {
    %c0_i32 = arith.constant 0 : i32
    %c0_i32_0 = arith.constant 0 : i32
    %c0_i32_1 = arith.constant 0 : i32
    return %c0_i32, %c0_i32_0 : i32, i32
  }
  func.func @transform_3(%arg0: i32) -> (i32, i32) {
    %c0_i32 = arith.constant 0 : i32
    %c0_i32_0 = arith.constant 0 : i32
    %c0_i32_1 = arith.constant 0 : i32
    return %c0_i32, %c0_i32_0 : i32, i32
  }
  func.func @transform_4(%arg0: i32) -> (i32, i32) {
    %c0_i32 = arith.constant 0 : i32
    %c0_i32_0 = arith.constant 0 : i32
    %c0_i32_1 = arith.constant 0 : i32
    return %c0_i32, %c0_i32_0 : i32, i32
  }
  func.func @transform_5(%arg0: i32) -> (i32, i32) {
    %c0_i32 = arith.constant 0 : i32
    %c0_i32_0 = arith.constant 0 : i32
    %c0_i32_1 = arith.constant 0 : i32
    return %c0_i32, %c0_i32_0 : i32, i32
  }
  func.func @transform_6(%arg0: i32) -> (i32, i32) {
    %c0_i32 = arith.constant 0 : i32
    %c0_i32_0 = arith.constant 0 : i32
    %c0_i32_1 = arith.constant 0 : i32
    return %c0_i32, %c0_i32_0 : i32, i32
  }
  func.func @transform_7(%arg0: i32) -> (i32, i32) {
    %c0_i32 = arith.constant 0 : i32
    %c0_i32_0 = arith.constant 0 : i32
    return %c0_i32, %arg0 : i32, i32
  }
}

</mosaic_0001>

<llo_original>
// kernel: tpu_custom_call.1
$region0: #{tpu_custom_call.1}
  #allocation0 [shape = 'u32[]', space=smem, size = 0x4, offset = 0x4, fixed_abs, tag = 'smem constant byte address 0x4 - core index']
  #allocation1 [shape = 'u32[144,128]{1,0:T(1,128)}', space=vmem, size = 0x12000, scoped, tag = 'internal scratch']
  %s0 = inlined_call_operand.vmem [shape: f32[8,128], index: 0, kind: input, shape index: {}]
  %s1 = inlined_call_operand.vmem [shape: f32[64,8], index: 1, kind: input, shape index: {}]
  %s2 = inlined_call_operand.vmem [shape: f32[64,1], index: 2, kind: input, shape index: {}]
  %s3 = inlined_call_operand.vmem [shape: f32[32,64], index: 3, kind: input, shape index: {}]
  %s4 = inlined_call_operand.vmem [shape: f32[32,1], index: 4, kind: input, shape index: {}]
  %s5 = inlined_call_operand.vmem [shape: f32[8,32], index: 5, kind: input, shape index: {}]
  %s6 = inlined_call_operand.vmem [shape: f32[8,1], index: 6, kind: input, shape index: {}]
  %s7 = inlined_call_operand.hbm [shape: f32[8,128], index: 7, kind: output, shape index: {}]
  %s8 = sld [smem:[#allocation0]]
  $region38: #{tpu_custom_call.1} parent=0
    _
  %s10 = ssub.s32 1, %s8
  %s11 = scalar_select 0, %s10, %s8
  $region1: #{tpu_custom_call.1} parent=0
    #allocation2 [shape = 'u8[4096]{0}', space=vmem, size = 0x1000, scoped, tag = 'output window, operand 0, single buffered']
    #allocation3 [shape = 's32[1]{0}', space=sflag, size = 0x4, scoped, tag = 'scoped memory for tpu_custom_call.1']
    %12 = vsyncpa [#allocation3], 0
    // Predicated region
    $region2: #{tpu_custom_call.1} parent=1 // pred_check
      _
    $region3: #{tpu_custom_call.1} parent=1 // pred_check_branch
      %14 = sbr.rel (0) target = $region5
    $region4: #{tpu_custom_call.1} parent=1 // pred_region
      _
    $region5: #{tpu_custom_call.1} parent=1 // pred_fallthru
      _
    // Predicated region
    $region6: #{tpu_custom_call.1} parent=1 // pred_check
      _
    $region7: #{tpu_custom_call.1} parent=1 // pred_check_branch
      %16 = sbr.rel (0) target = $region9
    $region8: #{tpu_custom_call.1} parent=1 // pred_region
      _
    $region9: #{tpu_custom_call.1} parent=1 // pred_fallthru
      _
    // Predicated region
    $region10: #{tpu_custom_call.1} parent=1 // pred_check
      _
    $region11: #{tpu_custom_call.1} parent=1 // pred_check_branch
      %18 = sbr.rel (0) target = $region13
    $region12: #{tpu_custom_call.1} parent=1 // pred_region
      _
    $region13: #{tpu_custom_call.1} parent=1 // pred_fallthru
      _
    // Predicated region
    $region14: #{tpu_custom_call.1} parent=1 // pred_check
      _
    $region15: #{tpu_custom_call.1} parent=1 // pred_check_branch
      %20 = sbr.rel (0) target = $region17
    $region16: #{tpu_custom_call.1} parent=1 // pred_region
      _
    $region17: #{tpu_custom_call.1} parent=1 // pred_fallthru
      _
    // Predicated region
    $region18: #{tpu_custom_call.1} parent=1 // pred_check
      _
    $region19: #{tpu_custom_call.1} parent=1 // pred_check_branch
      %22 = sbr.rel (0) target = $region21
    $region20: #{tpu_custom_call.1} parent=1 // pred_region
      _
    $region21: #{tpu_custom_call.1} parent=1 // pred_fallthru
      _
    // Predicated region
    $region22: #{tpu_custom_call.1} parent=1 // pred_check
      _
    $region23: #{tpu_custom_call.1} parent=1 // pred_check_branch
      %24 = sbr.rel (0) target = $region25
    $region24: #{tpu_custom_call.1} parent=1 // pred_region
      _
    $region25: #{tpu_custom_call.1} parent=1 // pred_fallthru
      _
    // Predicated region
    $region26: #{tpu_custom_call.1} parent=1 // pred_check
      _
    $region27: #{tpu_custom_call.1} parent=1 // pred_check_branch
      %26 = sbr.rel (0) target = $region29
    $region28: #{tpu_custom_call.1} parent=1 // pred_region
      _
    $region29: #{tpu_custom_call.1} parent=1 // pred_fallthru
      _
    %v27 = vld [vmem:[%s0] sm:$0xff]
    %v28 = vld [vmem:[%s1] sm:$0xff]
    %v29 = vld [vmem:[%s1 + $0x8] sm:$0xff]
    %v30 = vld [vmem:[%s1 + $0x10] sm:$0xff]
    %v31 = vld [vmem:[%s1 + $0x18] sm:$0xff]
    %v32 = vld [vmem:[%s1 + $0x20] sm:$0xff]
    %v33 = vld [vmem:[%s1 + $0x28] sm:$0xff]
    %v34 = vld [vmem:[%s1 + $0x30] sm:$0xff]
    %v35 = vld [vmem:[%s1 + $0x38] sm:$0xff]
    %v36 = vld [vmem:[%s2] sm:$0xff]
    %v37 = vld [vmem:[%s2 + $0x8] sm:$0xff]
    %v38 = vld [vmem:[%s2 + $0x10] sm:$0xff]
    %v39 = vld [vmem:[%s2 + $0x18] sm:$0xff]
    %v40 = vld [vmem:[%s2 + $0x20] sm:$0xff]
    %v41 = vld [vmem:[%s2 + $0x28] sm:$0xff]
    %v42 = vld [vmem:[%s2 + $0x30] sm:$0xff]
    %v43 = vld [vmem:[%s2 + $0x38] sm:$0xff]
    %45 = vset.pattern.permute.xlu0 0
    %46 = vperm.xlu0 %45, %v36
    %v47 = vpop.permute.xlu0 %46
    %50 = vset.pattern.permute.xlu0 0
    %51 = vperm.xlu0 %50, %v37
    %v52 = vpop.permute.xlu0 %51
    %55 = vset.pattern.permute.xlu0 0
    %56 = vperm.xlu0 %55, %v38
    %v57 = vpop.permute.xlu0 %56
    %60 = vset.pattern.permute.xlu0 0
    %61 = vperm.xlu0 %60, %v39
    %v62 = vpop.permute.xlu0 %61
    %65 = vset.pattern.permute.xlu0 0
    %66 = vperm.xlu0 %65, %v40
    %v67 = vpop.permute.xlu0 %66
    %70 = vset.pattern.permute.xlu0 0
    %71 = vperm.xlu0 %70, %v41
    %v72 = vpop.permute.xlu0 %71
    %75 = vset.pattern.permute.xlu0 0
    %76 = vperm.xlu0 %75, %v42
    %v77 = vpop.permute.xlu0 %76
    %80 = vset.pattern.permute.xlu0 0
    %81 = vperm.xlu0 %80, %v43
    %v82 = vpop.permute.xlu0 %81
    %vm84 = vcmask 64512
    %v86 = vsel %vm84, %v28, 0
    %v89 = vsel %vm84, %v29, 0
    %v92 = vsel %vm84, %v30, 0
    %v95 = vsel %vm84, %v31, 0
    %v98 = vsel %vm84, %v32, 0
    %v101 = vsel %vm84, %v33, 0
    %v104 = vsel %vm84, %v34, 0
    %v107 = vsel %vm84, %v35, 0
    %109 = vmatprep.subr.mxu0 0.0
    %110 = vmatpush1.msra.mxu0 %v27
    %111 = vmatprep.subr.mxu0 0.0
    %112 = vmatpush1.msra.mxu0 0.0
    %113 = vmatprep.subr.mxu0 0.0
    %114 = vmatpush1.msra.mxu0 0.0
    %115 = vmatprep.subr.mxu0 0.0
    %116 = vmatpush1.msra.mxu0 0.0
    %117 = vmatprep.subr.mxu0 0.0
    %118 = vmatpush1.msra.mxu0 0.0
    %119 = vmatprep.subr.mxu0 0.0
    %120 = vmatpush1.msra.mxu0 0.0
    %121 = vmatprep.subr.mxu0 0.0
    %122 = vmatpush1.msra.mxu0 0.0
    %123 = vmatprep.subr.mxu0 0.0
    %124 = vmatpush1.msra.mxu0 0.0
    %125 = vmatprep.subr.mxu0 0.0
    %126 = vmatpush1.msra.mxu0 0.0
    %127 = vmatprep.subr.mxu0 0.0
    %128 = vmatpush1.msra.mxu0 0.0
    %129 = vmatprep.subr.mxu0 0.0
    %130 = vmatpush1.msra.mxu0 0.0
    %131 = vmatprep.subr.mxu0 0.0
    %132 = vmatpush1.msra.mxu0 0.0
    %133 = vmatprep.subr.mxu0 0.0
    %134 = vmatpush1.msra.mxu0 0.0
    %135 = vmatprep.subr.mxu0 0.0
    %136 = vmatpush1.msra.mxu0 0.0
    %137 = vmatprep.subr.mxu0 0.0
    %138 = vmatpush1.msra.mxu0 0.0
    %139 = vmatprep.subr.mxu0 0.0
    %140 = vmatpush1.msra.mxu0 0.0
    %141 = vmatprep.subr.mxu0 0.0
    %142 = vmatpush1.msra.mxu0 0.0
    %143 = vmatprep.subr.mxu0 0.0
    %144 = vmatpush1.msra.mxu0 0.0
    %145 = vmatprep.subr.mxu0 0.0
    %146 = vmatpush1.msra.mxu0 0.0
    %147 = vmatprep.subr.mxu0 0.0
    %148 = vmatpush1.msra.mxu0 0.0
    %149 = vmatprep.subr.mxu0 0.0
    %150 = vmatpush1.msra.mxu0 0.0
    %151 = vmatprep.subr.mxu0 0.0
    %152 = vmatpush1.msra.mxu0 0.0
    %153 = vmatprep.subr.mxu0 0.0
    %154 = vmatpush1.msra.mxu0 0.0
    %155 = vmatprep.subr.mxu0 0.0
    %156 = vmatpush1.msra.mxu0 0.0
    %157 = vmatprep.subr.mxu0 0.0
    %158 = vmatpush1.msra.mxu0 0.0
    %159 = vmatprep.subr.mxu0 0.0
    %160 = vmatpush1.msra.mxu0 0.0
    %161 = vmatprep.subr.mxu0 0.0
    %162 = vmatpush1.msra.mxu0 0.0
    %163 = vmatprep.subr.mxu0 0.0
    %164 = vmatpush1.msra.mxu0 0.0
    %165 = vmatprep.subr.mxu0 0.0
    %166 = vmatpush1.msra.mxu0 0.0
    %167 = vmatprep.subr.mxu0 0.0
    %168 = vmatpush1.msra.mxu0 0.0
    %169 = vmatprep.subr.mxu0 0.0
    %170 = vmatpush1.msra.mxu0 0.0
    %171 = vmatprep.subr.mxu0 0.0
    %172 = vmatpush1.msra.mxu0 0.0
    %173 = vmatprep.mubr.f32.mxu0 0.0
    %174 = vmatmul.mubr.f32.gmra.mrb[0].mxu0 %v86
    %v175 = vpop.f32.mrb[0].mxu0
    %v176 = vadd.f32 %v47, %v175
    %v177 = vpop.f32.mrb[0].mxu0
    %178 = vmatprep.mubr.f32.mxu0 0.0
    %179 = vmatmul.mubr.f32.gmra.mrb[0].mxu0 %v89
    %v180 = vpop.f32.mrb[0].mxu0
    %v181 = vadd.f32 %v52, %v180
    %v182 = vpop.f32.mrb[0].mxu0
    %183 = vmatprep.mubr.f32.mxu0 0.0
    %184 = vmatmul.mubr.f32.gmra.mrb[0].mxu0 %v92
    %v185 = vpop.f32.mrb[0].mxu0
    %v186 = vadd.f32 %v57, %v185
    %v187 = vpop.f32.mrb[0].mxu0
    %188 = vmatprep.mubr.f32.mxu0 0.0
    %189 = vmatmul.mubr.f32.gmra.mrb[0].mxu0 %v95
    %v190 = vpop.f32.mrb[0].mxu0
    %v191 = vadd.f32 %v62, %v190
    %v192 = vpop.f32.mrb[0].mxu0
    %193 = vmatprep.mubr.f32.mxu0 0.0
    %194 = vmatmul.mubr.f32.gmra.mrb[0].mxu0 %v98
    %v195 = vpop.f32.mrb[0].mxu0
    %v196 = vadd.f32 %v67, %v195
    %v197 = vpop.f32.mrb[0].mxu0
    %198 = vmatprep.mubr.f32.mxu0 0.0
    %199 = vmatmul.mubr.f32.gmra.mrb[0].mxu0 %v101
    %v200 = vpop.f32.mrb[0].mxu0
    %v201 = vadd.f32 %v72, %v200
    %v202 = vpop.f32.mrb[0].mxu0
    %203 = vmatprep.mubr.f32.mxu0 0.0
    %204 = vmatmul.mubr.f32.gmra.mrb[0].mxu0 %v104
    %v205 = vpop.f32.mrb[0].mxu0
    %v206 = vadd.f32 %v77, %v205
    %v207 = vpop.f32.mrb[0].mxu0
    %208 = vmatprep.mubr.f32.mxu0 0.0
    %209 = vmatmul.mubr.f32.gmra.mrb[0].mxu0 %v107
    %v210 = vpop.f32.mrb[0].mxu0
    %v211 = vadd.f32 %v82, %v210
    %v212 = vpop.f32.mrb[0].mxu0
    %213 = vdwg.mxu0
    %v214 = vmax.f32 %v176, 0.0
    %v215 = vmax.f32 %v181, 0.0
    %v216 = vmax.f32 %v186, 0.0
    %v217 = vmax.f32 %v191, 0.0
    %v218 = vmax.f32 %v196, 0.0
    %v219 = vmax.f32 %v201, 0.0
    %v220 = vmax.f32 %v206, 0.0
    %v221 = vmax.f32 %v211, 0.0
    %v222 = vld [vmem:[%s3] sm:$0xff]
    %v223 = vld [vmem:[%s3 + $0x8] sm:$0xff]
    %v224 = vld [vmem:[%s3 + $0x10] sm:$0xff]
    %v225 = vld [vmem:[%s3 + $0x18] sm:$0xff]
    %v226 = vld [vmem:[%s4] sm:$0xff]
    %v227 = vld [vmem:[%s4 + $0x8] sm:$0xff]
    %v228 = vld [vmem:[%s4 + $0x10] sm:$0xff]
    %v229 = vld [vmem:[%s4 + $0x18] sm:$0xff]
    %231 = vset.pattern.permute.xlu0 0
    %232 = vperm.xlu0 %231, %v226
    %v233 = vpop.permute.xlu0 %232
    %236 = vset.pattern.permute.xlu0 0
    %237 = vperm.xlu0 %236, %v227
    %v238 = vpop.permute.xlu0 %237
    %241 = vset.pattern.permute.xlu0 0
    %242 = vperm.xlu0 %241, %v228
    %v243 = vpop.permute.xlu0 %242
    %246 = vset.pattern.permute.xlu0 0
    %247 = vperm.xlu0 %246, %v229
    %v248 = vpop.permute.xlu0 %247
    %vm250 = vcmask 523264
    %v252 = vsel %vm250, %v222, 0
    %v255 = vsel %vm250, %v223, 0
    %v258 = vsel %vm250, %v224, 0
    %v261 = vsel %vm250, %v225, 0
    %263 = vmatprep.subr.mxu0 0.0
    %264 = vmatpush1.msra.mxu0 %v214
    %265 = vmatprep.subr.mxu0 0.0
    %266 = vmatpush1.msra.mxu0 %v215
    %267 = vmatprep.subr.mxu0 0.0
    %268 = vmatpush1.msra.mxu0 %v216
    %269 = vmatprep.subr.mxu0 0.0
    %270 = vmatpush1.msra.mxu0 %v217
    %271 = vmatprep.subr.mxu0 0.0
    %272 = vmatpush1.msra.mxu0 %v218
    %273 = vmatprep.subr.mxu0 0.0
    %274 = vmatpush1.msra.mxu0 %v219
    %275 = vmatprep.subr.mxu0 0.0
    %276 = vmatpush1.msra.mxu0 %v220
    %277 = vmatprep.subr.mxu0 0.0
    %278 = vmatpush1.msra.mxu0 %v221
    %279 = vmatprep.subr.mxu0 0.0
    %280 = vmatpush1.msra.mxu0 0.0
    %281 = vmatprep.subr.mxu0 0.0
    %282 = vmatpush1.msra.mxu0 0.0
    %283 = vmatprep.subr.mxu0 0.0
    %284 = vmatpush1.msra.mxu0 0.0
    %285 = vmatprep.subr.mxu0 0.0
    %286 = vmatpush1.msra.mxu0 0.0
    %287 = vmatprep.subr.mxu0 0.0
    %288 = vmatpush1.msra.mxu0 0.0
    %289 = vmatprep.subr.mxu0 0.0
    %290 = vmatpush1.msra.mxu0 0.0
    %291 = vmatprep.subr.mxu0 0.0
    %292 = vmatpush1.msra.mxu0 0.0
    %293 = vmatprep.subr.mxu0 0.0
    %294 = vmatpush1.msra.mxu0 0.0
    %295 = vmatprep.subr.mxu0 0.0
    %296 = vmatpush1.msra.mxu0 0.0
    %297 = vmatprep.subr.mxu0 0.0
    %298 = vmatpush1.msra.mxu0 0.0
    %299 = vmatprep.subr.mxu0 0.0
    %300 = vmatpush1.msra.mxu0 0.0
    %301 = vmatprep.subr.mxu0 0.0
    %302 = vmatpush1.msra.mxu0 0.0
    %303 = vmatprep.subr.mxu0 0.0
    %304 = vmatpush1.msra.mxu0 0.0
    %305 = vmatprep.subr.mxu0 0.0
    %306 = vmatpush1.msra.mxu0 0.0
    %307 = vmatprep.subr.mxu0 0.0
    %308 = vmatpush1.msra.mxu0 0.0
    %309 = vmatprep.subr.mxu0 0.0
    %310 = vmatpush1.msra.mxu0 0.0
    %311 = vmatprep.subr.mxu0 0.0
    %312 = vmatpush1.msra.mxu0 0.0
    %313 = vmatprep.subr.mxu0 0.0
    %314 = vmatpush1.msra.mxu0 0.0
    %315 = vmatprep.subr.mxu0 0.0
    %316 = vmatpush1.msra.mxu0 0.0
    %317 = vmatprep.subr.mxu0 0.0
    %318 = vmatpush1.msra.mxu0 0.0
    %319 = vmatprep.subr.mxu0 0.0
    %320 = vmatpush1.msra.mxu0 0.0
    %321 = vmatprep.subr.mxu0 0.0
    %322 = vmatpush1.msra.mxu0 0.0
    %323 = vmatprep.subr.mxu0 0.0
    %324 = vmatpush1.msra.mxu0 0.0
    %325 = vmatprep.subr.mxu0 0.0
    %326 = vmatpush1.msra.mxu0 0.0
    %327 = vmatprep.mubr.f32.mxu0 0.0
    %328 = vmatmul.mubr.f32.gmra.mrb[0].mxu0 %v252
    %v329 = vpop.f32.mrb[0].mxu0
    %v330 = vadd.f32 %v233, %v329
    %v331 = vpop.f32.mrb[0].mxu0
    %332 = vmatprep.mubr.f32.mxu0 0.0
    %333 = vmatmul.mubr.f32.gmra.mrb[0].mxu0 %v255
    %v334 = vpop.f32.mrb[0].mxu0
    %v335 = vadd.f32 %v238, %v334
    %v336 = vpop.f32.mrb[0].mxu0
    %337 = vmatprep.mubr.f32.mxu0 0.0
    %338 = vmatmul.mubr.f32.gmra.mrb[0].mxu0 %v258
    %v339 = vpop.f32.mrb[0].mxu0
    %v340 = vadd.f32 %v243, %v339
    %v341 = vpop.f32.mrb[0].mxu0
    %342 = vmatprep.mubr.f32.mxu0 0.0
    %343 = vmatmul.mubr.f32.gmra.mrb[0].mxu0 %v261
    %v344 = vpop.f32.mrb[0].mxu0
    %v345 = vadd.f32 %v248, %v344
    %v346 = vpop.f32.mrb[0].mxu0
    %347 = vdwg.mxu0
    %v348 = vmax.f32 %v330, 0.0
    %v349 = vmax.f32 %v335, 0.0
    %v350 = vmax.f32 %v340, 0.0
    %v351 = vmax.f32 %v345, 0.0
    %v352 = vld [vmem:[%s5] sm:$0xff]
    %v353 = vld [vmem:[%s6] sm:$0xff]
    %355 = vset.pattern.permute.xlu0 0
    %356 = vperm.xlu0 %355, %v353
    %v357 = vpop.permute.xlu0 %356
    %vm359 = vcmask 261120
    %v361 = vsel %vm359, %v352, 0
    %363 = vmatprep.subr.mxu0 0.0
    %364 = vmatpush1.msra.mxu0 %v348
    %365 = vmatprep.subr.mxu0 0.0
    %366 = vmatpush1.msra.mxu0 %v349
    %367 = vmatprep.subr.mxu0 0.0
    %368 = vmatpush1.msra.mxu0 %v350
    %369 = vmatprep.subr.mxu0 0.0
    %370 = vmatpush1.msra.mxu0 %v351
    %371 = vmatprep.subr.mxu0 0.0
    %372 = vmatpush1.msra.mxu0 0.0
    %373 = vmatprep.subr.mxu0 0.0
    %374 = vmatpush1.msra.mxu0 0.0
    %375 = vmatprep.subr.mxu0 0.0
    %376 = vmatpush1.msra.mxu0 0.0
    %377 = vmatprep.subr.mxu0 0.0
    %378 = vmatpush1.msra.mxu0 0.0
    %379 = vmatprep.subr.mxu0 0.0
    %380 = vmatpush1.msra.mxu0 0.0
    %381 = vmatprep.subr.mxu0 0.0
    %382 = vmatpush1.msra.mxu0 0.0
    %383 = vmatprep.subr.mxu0 0.0
    %384 = vmatpush1.msra.mxu0 0.0
    %385 = vmatprep.subr.mxu0 0.0
    %386 = vmatpush1.msra.mxu0 0.0
    %387 = vmatprep.subr.mxu0 0.0
    %388 = vmatpush1.msra.mxu0 0.0
    %389 = vmatprep.subr.mxu0 0.0
    %390 = vmatpush1.msra.mxu0 0.0
    %391 = vmatprep.subr.mxu0 0.0
    %392 = vmatpush1.msra.mxu0 0.0
    %393 = vmatprep.subr.mxu0 0.0
    %394 = vmatpush1.msra.mxu0 0.0
    %395 = vmatprep.subr.mxu0 0.0
    %396 = vmatpush1.msra.mxu0 0.0
    %397 = vmatprep.subr.mxu0 0.0
    %398 = vmatpush1.msra.mxu0 0.0
    %399 = vmatprep.subr.mxu0 0.0
    %400 = vmatpush1.msra.mxu0 0.0
    %401 = vmatprep.subr.mxu0 0.0
    %402 = vmatpush1.msra.mxu0 0.0
    %403 = vmatprep.subr.mxu0 0.0
    %404 = vmatpush1.msra.mxu0 0.0
    %405 = vmatprep.subr.mxu0 0.0
    %406 = vmatpush1.msra.mxu0 0.0
    %407 = vmatprep.subr.mxu0 0.0
    %408 = vmatpush1.msra.mxu0 0.0
    %409 = vmatprep.subr.mxu0 0.0
    %410 = vmatpush1.msra.mxu0 0.0
    %411 = vmatprep.subr.mxu0 0.0
    %412 = vmatpush1.msra.mxu0 0.0
    %413 = vmatprep.subr.mxu0 0.0
    %414 = vmatpush1.msra.mxu0 0.0
    %415 = vmatprep.subr.mxu0 0.0
    %416 = vmatpush1.msra.mxu0 0.0
    %417 = vmatprep.subr.mxu0 0.0
    %418 = vmatpush1.msra.mxu0 0.0
    %419 = vmatprep.subr.mxu0 0.0
    %420 = vmatpush1.msra.mxu0 0.0
    %421 = vmatprep.subr.mxu0 0.0
    %422 = vmatpush1.msra.mxu0 0.0
    %423 = vmatprep.subr.mxu0 0.0
    %424 = vmatpush1.msra.mxu0 0.0
    %425 = vmatprep.subr.mxu0 0.0
    %426 = vmatpush1.msra.mxu0 0.0
    %427 = vmatprep.mubr.f32.mxu0 0.0
    %428 = vmatmul.mubr.f32.gmra.mrb[0].mxu0 %v361
    %v429 = vpop.f32.mrb[0].mxu0
    %v430 = vadd.f32 %v357, %v429
    %v431 = vpop.f32.mrb[0].mxu0
    %432 = vdwg.mxu0
    %433 = vst [vmem:[#allocation2] sm:$0xf] %v430
    %v434 = vmul.f32 %v430, 1.442695
    %v435 = vpow.pop %v434
    %436 = vst [vmem:[#allocation2] sm:$0xf0] %v435
    // Predicated region
    $region30: #{tpu_custom_call.1} parent=1 // pred_check
      _
    $region31: #{tpu_custom_call.1} parent=1 // pred_check_branch
      %438 = sbr.rel (0) target = $region33
    $region32: #{tpu_custom_call.1} parent=1 // pred_region
      %s440 = ssub.s32 128, 128
      %441 = vsyncadd [#allocation3], %s440
      %s443 = sshll.u32 [#allocation2], 4
      %s444 = int_to_ptr.vmem [resolvable:$true] %s443
      %446 = dma.vmem_to_hbm [thread:$0]  %s444, 128, %s7, [#allocation3]
    $region33: #{tpu_custom_call.1} parent=1 // pred_fallthru
      _
    // Predicated region
    $region34: #{tpu_custom_call.1} parent=1 // pred_check
      _
    $region35: #{tpu_custom_call.1} parent=1 // pred_check_branch
      %448 = sbr.rel (0) target = $region37
    $region36: #{tpu_custom_call.1} parent=1 // pred_region
      %449 = dma.done [#allocation3], 128
    $region37: #{tpu_custom_call.1} parent=1 // pred_fallthru
      _
    %450 = vsyncpa [#allocation3], 1

</llo_original>
